<compile_context>
chip_gen: v5e
topology: v5e:2x2
jax: 0.10.0
libtpu: 0.0.40
codegen_flags: <defaults>
</compile_context>

<pallas_src>
import functools

import jax
import jax.numpy as jnp
from jax.experimental import pallas as pl
from jax.experimental.pallas import tpu as pltpu


def _distill_kl_kernel(ys_ref, yt_ref, out_ref, *, inv_t, tile_rows, total_rows):
    """One batch tile: writes this tile's raw (un-scaled) KL sum to out_ref[0,0]."""
    i = pl.program_id(0)

    ys = ys_ref[...].astype(jnp.float32) * inv_t
    yt = yt_ref[...].astype(jnp.float32) * inv_t

    # Mask rows past the end of the batch (last, partial tile).  Zeroed logits
    # keep every op finite; their per-row KL is exactly zero and is also
    # explicitly discarded below.
    row = jax.lax.broadcasted_iota(jnp.int32, (tile_rows, 1), 0) + i * tile_rows
    valid = row < total_rows
    ys = jnp.where(valid, ys, 0.0)
    yt = jnp.where(valid, yt, 0.0)

    # Student: only the log-partition (logsumexp) is needed.
    ys_max = jnp.max(ys, axis=-1, keepdims=True)
    ys_shift = ys - ys_max
    log_z_s = jnp.log(jnp.sum(jnp.exp(ys_shift), axis=-1, keepdims=True))

    # Teacher: shifted exponentials + partition.
    yt_max = jnp.max(yt, axis=-1, keepdims=True)
    yt_shift = yt - yt_max
    exp_t = jnp.exp(yt_shift)
    z_t = jnp.sum(exp_t, axis=-1, keepdims=True)

    # Per-row KL(p_t || p_s), simplified (sum_c p_t == 1):
    #   kl_row = (1/z_t) * sum_c exp_t*(yt_shift - ys_shift) + log z_s - log z_t
    weighted = jnp.sum(exp_t * (yt_shift - ys_shift), axis=-1, keepdims=True)
    kl_row = weighted / z_t + log_z_s - jnp.log(z_t)  # per-row ops only
    kl_row = jnp.where(valid, kl_row, 0.0)

    out_ref[0, 0] = jnp.sum(kl_row)


def _choose_tile_rows(batch, classes):
    """Rows per batch tile, sized from a conservative VMEM budget.

    Live DMA footprint ~ 2 inputs x 2 pipeline buffers x TB*C*4B; an 8 MiB
    budget for that (plus headroom for in-kernel f32 temporaries) stays well
    inside the scoped VMEM limit on every generation, including v7x (64 MiB
    physical VMEM).
    """
    budget_bytes = 8 * 1024 * 1024
    tb = budget_bytes // (4 * classes * 4)
    tb = int(max(8, min(tb, 1024)))
    tb = (tb // 8) * 8
    if tb >= batch:
        return batch  # single tile: block equals the full batch axis
    return tb


def distill_kl(y_s, y_t, temperature, *, tile_rows=None):
    """Pallas TPU implementation of DistillKL.forward. Returns a scalar f32."""
    assert y_s.shape == y_t.shape and y_s.ndim == 2
    B, C = y_s.shape
    # TODO(synk): for vocab-sized C (>= ~32k) also tile over the class axis with
    # a streaming two-pass softmax; currently the full class axis must fit in
    # one VMEM block row.
    tb = tile_rows if tile_rows is not None else _choose_tile_rows(B, C)
    assert tb == B or tb % 8 == 0, "tile_rows must equal B or be a multiple of 8"
    num_tiles = pl.cdiv(B, tb)

    kernel = functools.partial(
        _distill_kl_kernel,
        inv_t=1.0 / float(temperature),
        tile_rows=tb,
        total_rows=B,
    )

    bytes_in = y_s.size * y_s.dtype.itemsize + y_t.size * y_t.dtype.itemsize
    cost = pl.CostEstimate(
        flops=10 * B * C,
        transcendentals=2 * B * C,
        bytes_accessed=bytes_in + num_tiles * 4,
    )

    partials = pl.pallas_call(
        kernel,
        out_shape=jax.ShapeDtypeStruct((num_tiles, 1), jnp.float32),
        grid=(num_tiles,),
        in_specs=[
            pl.BlockSpec((tb, C), lambda i: (i, 0)),
            pl.BlockSpec((tb, C), lambda i: (i, 0)),
        ],
        out_specs=pl.BlockSpec(
            (1, 1), lambda i: (i, 0), memory_space=pltpu.MemorySpace.SMEM
        ),
        compiler_params=pltpu.CompilerParams(
            dimension_semantics=("parallel",),
            vmem_limit_bytes=32 * 1024 * 1024,
        ),
        cost_estimate=cost,
    )(y_s, y_t)

    # Final reduction + T^2 / batch scaling outside the kernel, so the
    # "parallel" tile axis never races on a shared accumulator (uses both
    # TensorCores on v7x).
    return jnp.sum(partials) * (float(temperature) ** 2) / B


def _reference(y_s, y_t, temperature):
    ys = y_s.astype(jnp.float32) / temperature
    yt = y_t.astype(jnp.float32) / temperature
    log_p_s = jax.nn.log_softmax(ys, axis=1)
    p_t = jax.nn.softmax(yt, axis=1)
    log_p_t = jax.nn.log_softmax(yt, axis=1)
    return jnp.sum(p_t * (log_p_t - log_p_s)) * temperature**2 / y_s.shape[0]


if __name__ == "__main__":
    T = 4.0  # distillation temperature

    # Small classification-head shape: batch x num_classes (single-tile path).
    B, C = 8, 128
    key = jax.random.PRNGKey(0)
    k_s, k_t = jax.random.split(key)
    y_s = jax.random.normal(k_s, (B, C), dtype=jnp.float32)
    y_t = jax.random.normal(k_t, (B, C), dtype=jnp.float32)

    loss = distill_kl(y_s, y_t, T)
    jax.block_until_ready(loss)
    ref = _reference(y_s, y_t, T)
    assert jnp.allclose(loss, ref, rtol=1e-5, atol=1e-5), (loss, ref)

    # Multi-tile grid path (batch not divisible by the tile) with bf16 logits
    # (halves HBM traffic on this bandwidth-bound kernel).
    B2, C2 = 20, 256
    k_s2, k_t2 = jax.random.split(jax.random.PRNGKey(1))
    y_s2 = jax.random.normal(k_s2, (B2, C2), dtype=jnp.float32).astype(jnp.bfloat16)
    y_t2 = jax.random.normal(k_t2, (B2, C2), dtype=jnp.float32).astype(jnp.bfloat16)
    loss2 = distill_kl(y_s2, y_t2, T, tile_rows=8)
    jax.block_until_ready(loss2)
    ref2 = _reference(y_s2, y_t2, T)
    assert jnp.allclose(loss2, ref2, rtol=1e-4, atol=1e-4), (loss2, ref2)

    print("KERNEL_OK")
</pallas_src>

<mosaic_0001>
module attributes {stable_mosaic.version = 11 : i64} {
  func.func @_distill_kl_kernel(%arg0: i32, %arg1: memref<8x128xf32, #tpu.memory_space<vmem>>, %arg2: memref<8x128xf32, #tpu.memory_space<vmem>>, %arg3: memref<1x1xf32, #tpu.memory_space<smem>>) attributes {dimension_semantics = [#tpu.dimension_semantics<parallel>], iteration_bounds = array<i64: 1>, scalar_prefetch = 0 : i64, scratch_operands = 0 : i64, tpu.core_type = #tpu.core_type<tc>, window_params = [{transform_indices = @transform_0, window_bounds = array<i64: 8, 128>}, {transform_indices = @transform_1, window_bounds = array<i64: 8, 128>}, {transform_indices = @transform_2, window_bounds = array<i64: 1, 1>}]} {
    %c0 = arith.constant 0 : index
    %c0_0 = arith.constant 0 : index
    %0 = vector.load %arg1[%c0, %c0_0] : memref<8x128xf32, #tpu.memory_space<vmem>>, vector<8x128xf32>
    %cst = arith.constant 2.500000e-01 : f32
    %1 = vector.broadcast %cst : f32 to vector<8x128xf32>
    %2 = arith.mulf %0, %1 : vector<8x128xf32>
    %c0_1 = arith.constant 0 : index
    %c0_2 = arith.constant 0 : index
    %3 = vector.load %arg2[%c0_1, %c0_2] : memref<8x128xf32, #tpu.memory_space<vmem>>, vector<8x128xf32>
    %cst_3 = arith.constant 2.500000e-01 : f32
    %4 = vector.broadcast %cst_3 : f32 to vector<8x128xf32>
    %5 = arith.mulf %3, %4 : vector<8x128xf32>
    %6 = tpu.iota {dimensions = array<i32: 0>} : vector<8x1xi32>
    %c8_i32 = arith.constant 8 : i32
    %7 = arith.muli %arg0, %c8_i32 : i32
    %8 = vector.broadcast %7 : i32 to vector<8x1xi32>
    %9 = arith.addi %6, %8 : vector<8x1xi32>
    %c8_i32_4 = arith.constant 8 : i32
    %10 = vector.broadcast %c8_i32_4 : i32 to vector<8x1xi32>
    %11 = arith.cmpi slt, %9, %10 : vector<8x1xi32>
    %cst_5 = arith.constant 0.000000e+00 : f32
    %12 = vector.shape_cast %11 : vector<8x1xi1> to vector<8x1xi1>
    %13 = vector.broadcast %12 : vector<8x1xi1> to vector<8x128xi1>
    %14 = vector.broadcast %cst_5 : f32 to vector<8x128xf32>
    %15 = arith.select %13, %2, %14 : vector<8x128xi1>, vector<8x128xf32>
    %cst_6 = arith.constant 0.000000e+00 : f32
    %16 = vector.shape_cast %11 : vector<8x1xi1> to vector<8x1xi1>
    %17 = vector.broadcast %16 : vector<8x1xi1> to vector<8x128xi1>
    %18 = vector.broadcast %cst_6 : f32 to vector<8x128xf32>
    %19 = arith.select %17, %5, %18 : vector<8x128xi1>, vector<8x128xf32>
    %cst_7 = arith.constant dense<0xFF800000> : vector<8xf32>
    %20 = vector.multi_reduction <maximumf>, %15, %cst_7 [1] : vector<8x128xf32> to vector<8xf32>
    %21 = vector.shape_cast %20 : vector<8xf32> to vector<8x1xf32>
    %22 = vector.broadcast %21 : vector<8x1xf32> to vector<8x128xf32>
    %23 = arith.subf %15, %22 : vector<8x128xf32>
    %24 = math.exp %23 : vector<8x128xf32>
    %cst_8 = arith.constant dense<0.000000e+00> : vector<8xf32>
    %25 = vector.multi_reduction <add>, %24, %cst_8 [1] : vector<8x128xf32> to vector<8xf32>
    %26 = vector.shape_cast %25 : vector<8xf32> to vector<8x1xf32>
    %27 = math.log %26 : vector<8x1xf32>
    %cst_9 = arith.constant dense<0xFF800000> : vector<8xf32>
    %28 = vector.multi_reduction <maximumf>, %19, %cst_9 [1] : vector<8x128xf32> to vector<8xf32>
    %29 = vector.shape_cast %28 : vector<8xf32> to vector<8x1xf32>
    %30 = vector.broadcast %29 : vector<8x1xf32> to vector<8x128xf32>
    %31 = arith.subf %19, %30 : vector<8x128xf32>
    %32 = math.exp %31 : vector<8x128xf32>
    %cst_10 = arith.constant dense<0.000000e+00> : vector<8xf32>
    %33 = vector.multi_reduction <add>, %32, %cst_10 [1] : vector<8x128xf32> to vector<8xf32>
    %34 = vector.shape_cast %33 : vector<8xf32> to vector<8x1xf32>
    %35 = arith.subf %31, %23 : vector<8x128xf32>
    %36 = arith.mulf %32, %35 : vector<8x128xf32>
    %cst_11 = arith.constant dense<0.000000e+00> : vector<8xf32>
    %37 = vector.multi_reduction <add>, %36, %cst_11 [1] : vector<8x128xf32> to vector<8xf32>
    %38 = vector.shape_cast %37 : vector<8xf32> to vector<8x1xf32>
    %39 = arith.divf %38, %34 : vector<8x1xf32>
    %40 = arith.addf %39, %27 : vector<8x1xf32>
    %41 = math.log %34 : vector<8x1xf32>
    %42 = arith.subf %40, %41 : vector<8x1xf32>
    %cst_12 = arith.constant 0.000000e+00 : f32
    %43 = vector.broadcast %cst_12 : f32 to vector<8x1xf32>
    %44 = arith.select %11, %42, %43 : vector<8x1xi1>, vector<8x1xf32>
    %45 = vector.shape_cast %44 : vector<8x1xf32> to vector<1x8x1xf32>
    %cst_13 = arith.constant dense<0.000000e+00> : vector<1xf32>
    %46 = vector.multi_reduction <add>, %45, %cst_13 [1, 2] : vector<1x8x1xf32> to vector<1xf32>
    %47 = vector.shape_cast %46 : vector<1xf32> to vector<1x1x1xf32>
    %48 = vector.extract %47[0, 0, 0] : f32 from vector<1x1x1xf32>
    %c0_14 = arith.constant 0 : index
    %c0_15 = arith.constant 0 : index
    %49 = memref.load %arg3[%c0_14, %c0_15] : memref<1x1xf32, #tpu.memory_space<smem>>
    memref.store %48, %arg3[%c0_14, %c0_15] : memref<1x1xf32, #tpu.memory_space<smem>>
    return
  }
  func.func @transform_0(%arg0: i32) -> (i32, i32) {
    %c0_i32 = arith.constant 0 : i32
    %c0_i32_0 = arith.constant 0 : i32
    return %arg0, %c0_i32 : i32, i32
  }
  func.func @transform_1(%arg0: i32) -> (i32, i32) {
    %c0_i32 = arith.constant 0 : i32
    %c0_i32_0 = arith.constant 0 : i32
    return %arg0, %c0_i32 : i32, i32
  }
  func.func @transform_2(%arg0: i32) -> (i32, i32) {
    %c0_i32 = arith.constant 0 : i32
    %c0_i32_0 = arith.constant 0 : i32
    return %arg0, %c0_i32 : i32, i32
  }
}

</mosaic_0001>

<llo_original>
// kernel: tpu_custom_call.1
$region0: #{tpu_custom_call.1}
  #allocation0 [shape = 'u32[]', space=smem, size = 0x4, offset = 0x4, fixed_abs, tag = 'smem constant byte address 0x4 - core index']
  #allocation1 [shape = 'u32[72,128]{1,0:T(1,128)}', space=vmem, size = 0x9000, scoped, tag = 'internal scratch']
  %s0 = inlined_call_operand.hbm [shape: f32[8,128], index: 0, kind: input, shape index: {}]
  %s1 = inlined_call_operand.hbm [shape: f32[8,128], index: 1, kind: input, shape index: {}]
  %s2 = inlined_call_operand.hbm [shape: f32[1,1], index: 2, kind: output, shape index: {}]
  %s3 = sld [smem:[#allocation0]]
  $region26: #{tpu_custom_call.1} parent=0
    _
  %s5 = ssub.s32 1, %s3
  %s6 = scalar_select 0, %s5, %s3
  $region1: #{tpu_custom_call.1} parent=0
    #allocation2 [shape = 'u8[4096]{0}', space=vmem, size = 0x1000, scoped, tag = 'input window, operand 0, single buffered']
    #allocation3 [shape = 's32[1]{0}', space=sflag, size = 0x4, scoped, tag = 'scoped memory for tpu_custom_call.1']
    #allocation4 [shape = 's32[1]{0}', space=sflag, size = 0x4, scoped, tag = 'scoped memory for tpu_custom_call.1']
    #allocation5 [shape = 'u8[4096]{0}', space=vmem, size = 0x1000, scoped, tag = 'input window, operand 1, single buffered']
    #allocation6 [shape = 's32[1]{0}', space=sflag, size = 0x4, scoped, tag = 'scoped memory for tpu_custom_call.1']
    #allocation7 [shape = 'u8[512]{0}', space=smem, size = 0x200, scoped, tag = 'output window, operand 0, single buffered']
    %7 = vsyncpa [#allocation3], 0
    %8 = vsyncpa [#allocation6], 0
    %9 = vsyncpa [#allocation4], 0
    // Predicated region
    $region2: #{tpu_custom_call.1} parent=1 // pred_check
      _
    $region3: #{tpu_custom_call.1} parent=1 // pred_check_branch
      %11 = sbr.rel (0) target = $region5
    $region4: #{tpu_custom_call.1} parent=1 // pred_region
      %13 = vsyncadd [#allocation3], 0
      %s15 = sshll.u32 %s0, 4
      %s16 = int_to_ptr.hbm [resolvable:$true] %s15
      %s17 = sshll.u32 [#allocation2], 4
      %s18 = int_to_ptr.vmem [resolvable:$true] %s17
      %20 = dma.hbm_to_vmem [thread:$0]  %s16, 128, %s18, [#allocation3]
    $region5: #{tpu_custom_call.1} parent=1 // pred_fallthru
      _
    // Predicated region
    $region6: #{tpu_custom_call.1} parent=1 // pred_check
      _
    $region7: #{tpu_custom_call.1} parent=1 // pred_check_branch
      %22 = sbr.rel (0) target = $region9
    $region8: #{tpu_custom_call.1} parent=1 // pred_region
      %24 = vsyncadd [#allocation6], 0
      %s26 = sshll.u32 %s1, 4
      %s27 = int_to_ptr.hbm [resolvable:$true] %s26
      %s28 = sshll.u32 [#allocation5], 4
      %s29 = int_to_ptr.vmem [resolvable:$true] %s28
      %31 = dma.hbm_to_vmem [thread:$0]  %s27, 128, %s29, [#allocation6]
    $region9: #{tpu_custom_call.1} parent=1 // pred_fallthru
      _
    // Predicated region
    $region10: #{tpu_custom_call.1} parent=1 // pred_check
      _
    $region11: #{tpu_custom_call.1} parent=1 // pred_check_branch
      %33 = sbr.rel (0) target = $region13
    $region12: #{tpu_custom_call.1} parent=1 // pred_region
      %35 = dma.done [#allocation3], 128
    $region13: #{tpu_custom_call.1} parent=1 // pred_fallthru
      _
    // Predicated region
    $region14: #{tpu_custom_call.1} parent=1 // pred_check
      _
    $region15: #{tpu_custom_call.1} parent=1 // pred_check_branch
      %37 = sbr.rel (0) target = $region17
    $region16: #{tpu_custom_call.1} parent=1 // pred_region
      %39 = dma.done [#allocation6], 128
    $region17: #{tpu_custom_call.1} parent=1 // pred_fallthru
      _
    %v40 = vld [vmem:[#allocation2] sm:$0xff]
    %v41 = vmul.f32 %v40, 0.25
    %v42 = vld [vmem:[#allocation5] sm:$0xff]
    %v43 = vmul.f32 %v42, 0.25
    %v44 = vlaneseq
    %v45 = vshrl.u32 %v44, 7
    %s46 = smul.u32 0, 8
    %v47 = vstv %s46
    %v48 = vadd.s32 %v45, %v47
    %vm49 = vcmp.lt.s32.totalorder %v48, 8
    %v50 = vsel %vm49, 1, 0
    %vm51 = vcmp.eq.s32.totalorder %v50, 1
    %v52 = vsel %vm51, %v41, 0.0
    %v53 = vsel %vm51, %v43, 0.0
    %54 = vmax.xlane.f32.xlu0 %v52
    %v55 = vpop.xlane.xlu0 %54
    %v56 = vsub.f32 %v52, %v55
    %v57 = vmul.f32 %v56, 1.442695
    %v58 = vpow.pop %v57
    %59 = vadd.xlane.f32.xlu0 %v58
    %v60 = vpop.xlane.xlu0 %59
    %v61 = vlog2.pop %v60
    %v62 = vmul.f32 %v61, 0.6931472
    %63 = vmax.xlane.f32.xlu0 %v53
    %v64 = vpop.xlane.xlu0 %63
    %v65 = vsub.f32 %v53, %v64
    %v66 = vmul.f32 %v65, 1.442695
    %v67 = vpow.pop %v66
    %68 = vadd.xlane.f32.xlu0 %v67
    %v69 = vpop.xlane.xlu0 %68
    %v70 = vsub.f32 %v65, %v56
    %v71 = vmul.f32 %v67, %v70
    %72 = vadd.xlane.f32.xlu0 %v71
    %v73 = vpop.xlane.xlu0 %72
    %v74 = vrcp.pop %v69
    %v75 = vmul.f32 %v69, %v74
    %v76 = vsub.f32 1.0, %v75
    %v77 = vmul.f32 %v74, %v76
    %v78 = vadd.f32 %v74, %v77
    %vm79 = vweird.f32 %v69
    %vm80 = vweird.f32 %v74
    %vm81 = vmor %vm79, %vm80
    %v82 = vsel %vm81, %v74, %v78
    %v83 = vand.u32 2147483647, %v69
    %vm84 = vcmp.eq.f32.partialorder %v83, 8.507059e+37
    %v85 = vand.u32 %v69, 2147483648
    %v86 = vor.u32 1.1754944e-38, %v85
    %v87 = vsel %vm84, %v86, %v82
    %v88 = vmul.f32 %v73, %v87
    %v89 = vadd.f32 %v88, %v62
    %v90 = vlog2.pop %v69
    %v91 = vmul.f32 %v90, 0.6931472
    %v92 = vsub.f32 %v89, %v91
    %v93 = vsel %vm49, %v92, 0.0
    %vm94 = vcmask 7168
    %v95 = vsel %vm94, %v93, 0.0
    %96 = vadd.xlane.f32.xlu0 %v95
    %v97 = vpop.xlane.xlu0 %96
    %v98 = vrot.slane %v97, 4
    %v99 = vadd.f32 %v97, %v98
    %v100 = vrot.slane %v99, 2
    %v101 = vadd.f32 %v99, %v100
    %v102 = vrot.slane %v101, 1
    %v103 = vadd.f32 %v101, %v102
    %s104 = vtos %v103
    %s105 = scalar_lea.smem [#allocation7], 0
    %106 = sst [smem:[%s105]] %s104
    // Predicated region
    $region18: #{tpu_custom_call.1} parent=1 // pred_check
      _
    $region19: #{tpu_custom_call.1} parent=1 // pred_check_branch
      %108 = sbr.rel (0) target = $region21
    $region20: #{tpu_custom_call.1} parent=1 // pred_region
      %110 = vsyncadd [#allocation4], 0
      %s112 = sshll.u32 %s2, 4
      %s113 = int_to_ptr.hbm [resolvable:$true] %s112
      %115 = dma.smem_to_hbm [#allocation7], 16, %s113, [#allocation4]
    $region21: #{tpu_custom_call.1} parent=1 // pred_fallthru
      _
    // Predicated region
    $region22: #{tpu_custom_call.1} parent=1 // pred_check
      _
    $region23: #{tpu_custom_call.1} parent=1 // pred_check_branch
      %117 = sbr.rel (0) target = $region25
    $region24: #{tpu_custom_call.1} parent=1 // pred_region
      %119 = dma.done [#allocation4], 16
    $region25: #{tpu_custom_call.1} parent=1 // pred_fallthru
      _
    %120 = sfence
    %121 = vsyncpa [#allocation3], 1
    %122 = vsyncpa [#allocation6], 1
    %123 = vsyncpa [#allocation4], 1

</llo_original>
